<compile_context>
chip_gen: v6e
topology: v6e:2x2x1
jax: 0.10.0
libtpu: 0.0.40
codegen_flags: <defaults>
</compile_context>

<pallas_src>
import functools

import jax
import jax.numpy as jnp
from jax.experimental import pallas as pl
from jax.experimental.pallas import tpu as pltpu

IMG_SIZE = 240   # PIL resize target (240, 240)
IMG_PAD = 256    # lane-dense padded output width (multiple of 128); sliced back to 240


def save_nn_image_kernel(x_ref, r_ref, ct_ref, img_ref):
    # x_ref block is (1, 1, H, W): only x[0, 0] is DMA'd into VMEM.
    frame = x_ref[0, 0, :, :].astype(jnp.float32) * 255.0                      # (H, W)
    # Nearest-neighbor resize via one-hot gather matrices on the MXU:
    #   img = R @ frame @ Ct,  R: (240, H) one-hot rows, Ct: (W, 256) one-hot cols (lane-padded).
    rows = jnp.dot(r_ref[...], frame, preferred_element_type=jnp.float32)      # (240, W)
    img_ref[...] = jnp.dot(rows, ct_ref[...], preferred_element_type=jnp.float32)  # (240, 256)


def _nearest_idx(dst_size: int, src_size: int) -> jnp.ndarray:
    # PIL NEAREST convention: src index = floor((i + 0.5) * src/dst), clipped.
    return jnp.clip(
        jnp.floor((jnp.arange(dst_size, dtype=jnp.float32) + 0.5)
                  * (src_size / dst_size)).astype(jnp.int32),
        0, src_size - 1)


@functools.lru_cache(maxsize=None)
def _gather_mats(H: int, W: int):
    # Built once per (H, W); reused for every frame.
    R = jax.nn.one_hot(_nearest_idx(IMG_SIZE, H), H, dtype=jnp.float32)        # (240, H)
    C = jax.nn.one_hot(_nearest_idx(IMG_SIZE, W), W, dtype=jnp.float32)        # (240, W)
    Ct = jnp.zeros((W, IMG_PAD), jnp.float32).at[:, :IMG_SIZE].set(C.T)        # (W, 256)
    return R, Ct


def save_nn_image_frame(x: jnp.ndarray) -> jnp.ndarray:
    """Returns the 240x240 float32 frame payload (x[0,0]*255, nearest-resized)."""
    N, C, H, W = x.shape
    R, Ct = _gather_mats(H, W)
    img_padded = pl.pallas_call(
        save_nn_image_kernel,
        out_shape=jax.ShapeDtypeStruct((IMG_SIZE, IMG_PAD), jnp.float32),
        grid=(1,),
        in_specs=[
            # Only the (1, 1, H, W) slice of x is ever moved HBM -> VMEM.
            pl.BlockSpec((1, 1, H, W), lambda i: (0, 0, 0, 0)),
            pl.BlockSpec((IMG_SIZE, H), lambda i: (0, 0)),
            pl.BlockSpec((W, IMG_PAD), lambda i: (0, 0)),
        ],
        out_specs=pl.BlockSpec((IMG_SIZE, IMG_PAD), lambda i: (0, 0)),
        compiler_params=pltpu.CompilerParams(dimension_semantics=("arbitrary",)),
    )(x, R, Ct)
    return img_padded[:, :IMG_SIZE]


class SaveNNImage:
    """Python-side wrapper mirroring the torch module's stateful bits."""

    def __init__(self):
        self.frame = 0
        self.fp_out = './images/conv_layer_frame'

    def __call__(self, x):
        self.frame += 1
        img240 = save_nn_image_frame(x)
        # TODO(synk): PIL Image.fromarray(...).save(fp_out + frame + '.gif') is host
        # file I/O / GIF encoding with no Pallas equivalent; img240 is the payload.
        print(self.frame)
        # Identity pass-through: return x itself — exact, no HBM copy, no dtype cast.
        return x, img240


if __name__ == "__main__":
    key = jax.random.PRNGKey(0)
    x = jax.random.uniform(key, (2, 4, 16, 16), dtype=jnp.float32)  # NCHW

    module = SaveNNImage()
    out, img240 = module(x)
    out = jax.block_until_ready(out)
    img240 = jax.block_until_ready(img240)

    # Forward must be an exact identity on x.
    assert out.shape == x.shape and out.dtype == x.dtype
    assert bool(jnp.all(out == x))
    assert img240.shape == (IMG_SIZE, IMG_SIZE)

    # Check the resized frame against a pure-JAX nearest-neighbor reference.
    H, W = x.shape[2], x.shape[3]
    ri = _nearest_idx(IMG_SIZE, H)
    ci = _nearest_idx(IMG_SIZE, W)
    ref = (x[0, 0] * 255.0)[ri][:, ci]
    assert bool(jnp.allclose(img240, ref, atol=1e-5))

    print("KERNEL_OK")
</pallas_src>

<mosaic_0001>
module attributes {stable_mosaic.version = 11 : i64} {
  func.func @save_nn_image_kernel(%arg0: i32, %arg1: memref<1x1x16x16xf32, #tpu.memory_space<vmem>>, %arg2: memref<240x16xf32, #tpu.memory_space<vmem>>, %arg3: memref<16x256xf32, #tpu.memory_space<vmem>>, %arg4: memref<240x256xf32, #tpu.memory_space<vmem>>) attributes {dimension_semantics = [#tpu.dimension_semantics<arbitrary>], iteration_bounds = array<i64: 1>, scalar_prefetch = 0 : i64, scratch_operands = 0 : i64, tpu.core_type = #tpu.core_type<tc>, window_params = [{transform_indices = @transform_0, window_bounds = array<i64: 1, 1, 16, 16>}, {pipeline_mode = #tpu.pipeline_mode<synchronous>, transform_indices = @transform_1, window_bounds = array<i64: 240, 16>}, {pipeline_mode = #tpu.pipeline_mode<synchronous>, transform_indices = @transform_2, window_bounds = array<i64: 16, 256>}, {pipeline_mode = #tpu.pipeline_mode<synchronous>, transform_indices = @transform_3, window_bounds = array<i64: 240, 256>}]} {
    %c0 = arith.constant 0 : index
    %c0_0 = arith.constant 0 : index
    %c0_1 = arith.constant 0 : index
    %c0_2 = arith.constant 0 : index
    %0 = vector.load %arg1[%c0, %c0_0, %c0_1, %c0_2] : memref<1x1x16x16xf32, #tpu.memory_space<vmem>>, vector<1x1x16x16xf32>
    %1 = vector.shape_cast %0 : vector<1x1x16x16xf32> to vector<16x16xf32>
    %cst = arith.constant 2.550000e+02 : f32
    %2 = vector.broadcast %cst : f32 to vector<16x16xf32>
    %3 = arith.mulf %1, %2 : vector<16x16xf32>
    %c0_3 = arith.constant 0 : index
    %c0_4 = arith.constant 0 : index
    %4 = vector.load %arg2[%c0_3, %c0_4] : memref<240x16xf32, #tpu.memory_space<vmem>>, vector<240x16xf32>
    %cst_5 = arith.constant dense<0.000000e+00> : vector<240x16xf32>
    %5 = tpu.matmul %4, %3, %cst_5 {dimension_numbers = #tpu.dot_dimension_numbers<[1], [0], [0], [1], [0, 0, 1, 1], [], []>} : vector<240x16xf32>, vector<16x16xf32>, vector<240x16xf32> -> vector<240x16xf32>
    %c0_6 = arith.constant 0 : index
    %c0_7 = arith.constant 0 : index
    %6 = vector.load %arg3[%c0_6, %c0_7] : memref<16x256xf32, #tpu.memory_space<vmem>>, vector<16x256xf32>
    %cst_8 = arith.constant dense<0.000000e+00> : vector<240x256xf32>
    %7 = tpu.matmul %5, %6, %cst_8 {dimension_numbers = #tpu.dot_dimension_numbers<[1], [0], [0], [1], [0, 0, 1, 1], [], []>} : vector<240x16xf32>, vector<16x256xf32>, vector<240x256xf32> -> vector<240x256xf32>
    %c0_9 = arith.constant 0 : index
    %c0_10 = arith.constant 0 : index
    %8 = vector.load %arg4[%c0_9, %c0_10] : memref<240x256xf32, #tpu.memory_space<vmem>>, vector<240x256xf32>
    tpu.vector_store %arg4[%c0_9, %c0_10], %7 {strides = array<i32>} : memref<240x256xf32, #tpu.memory_space<vmem>>, vector<240x256xf32>,
    return
  }
  func.func @transform_0(%arg0: i32) -> (i32, i32, i32, i32) {
    %c0_i32 = arith.constant 0 : i32
    %c0_i32_0 = arith.constant 0 : i32
    %c0_i32_1 = arith.constant 0 : i32
    %c0_i32_2 = arith.constant 0 : i32
    %c0_i32_3 = arith.constant 0 : i32
    return %c0_i32, %c0_i32_0, %c0_i32_1, %c0_i32_2 : i32, i32, i32, i32
  }
  func.func @transform_1(%arg0: i32) -> (i32, i32) {
    %c0_i32 = arith.constant 0 : i32
    %c0_i32_0 = arith.constant 0 : i32
    %c0_i32_1 = arith.constant 0 : i32
    return %c0_i32, %c0_i32_0 : i32, i32
  }
  func.func @transform_2(%arg0: i32) -> (i32, i32) {
    %c0_i32 = arith.constant 0 : i32
    %c0_i32_0 = arith.constant 0 : i32
    %c0_i32_1 = arith.constant 0 : i32
    return %c0_i32, %c0_i32_0 : i32, i32
  }
  func.func @transform_3(%arg0: i32) -> (i32, i32) {
    %c0_i32 = arith.constant 0 : i32
    %c0_i32_0 = arith.constant 0 : i32
    %c0_i32_1 = arith.constant 0 : i32
    return %c0_i32, %c0_i32_0 : i32, i32
  }
}

</mosaic_0001>

<llo_original>
// kernel: tpu_custom_call.1
$region0: #{tpu_custom_call.1}
  #allocation0 [shape = 'u32[]', space=smem, size = 0x4, offset = 0x4, fixed_abs, tag = 'smem constant byte address 0x4 - core index']
  #allocation1 [shape = 'u32[144,128]{1,0:T(1,128)}', space=vmem, size = 0x12000, scoped, tag = 'internal scratch']
  %s0 = inlined_call_operand.vmem [shape: f32[2,4,16,16], index: 0, kind: input, shape index: {}]
  %s1 = inlined_call_operand.vmem [shape: f32[240,16], index: 1, kind: input, shape index: {}]
  %s2 = inlined_call_operand.vmem [shape: f32[16,256], index: 2, kind: input, shape index: {}]
  %s3 = inlined_call_operand.hbm [shape: f32[240,256], index: 3, kind: output, shape index: {}]
  %s4 = sld [smem:[#allocation0]]
  $region22: #{tpu_custom_call.1} parent=0
    _
  %s6 = ssub.s32 1, %s4
  %s7 = scalar_select 0, %s6, %s4
  $region1: #{tpu_custom_call.1} parent=0
    #allocation2 [shape = 'u8[245760]{0}', space=vmem, size = 0x3c000, scoped, tag = 'output window, operand 0, single buffered']
    #allocation3 [shape = 's32[1]{0}', space=sflag, size = 0x4, scoped, tag = 'scoped memory for tpu_custom_call.1']
    %8 = vsyncpa [#allocation3], 0
    // Predicated region
    $region2: #{tpu_custom_call.1} parent=1 // pred_check
      _
    $region3: #{tpu_custom_call.1} parent=1 // pred_check_branch
      %10 = sbr.rel (0) target = $region5
    $region4: #{tpu_custom_call.1} parent=1 // pred_region
      _
    $region5: #{tpu_custom_call.1} parent=1 // pred_fallthru
      _
    // Predicated region
    $region6: #{tpu_custom_call.1} parent=1 // pred_check
      _
    $region7: #{tpu_custom_call.1} parent=1 // pred_check_branch
      %12 = sbr.rel (0) target = $region9
    $region8: #{tpu_custom_call.1} parent=1 // pred_region
      _
    $region9: #{tpu_custom_call.1} parent=1 // pred_fallthru
      _
    // Predicated region
    $region10: #{tpu_custom_call.1} parent=1 // pred_check
      _
    $region11: #{tpu_custom_call.1} parent=1 // pred_check_branch
      %14 = sbr.rel (0) target = $region13
    $region12: #{tpu_custom_call.1} parent=1 // pred_region
      _
    $region13: #{tpu_custom_call.1} parent=1 // pred_fallthru
      _
    %v15 = vld [vmem:[%s0] sm:$0xff]
    %v16 = vld [vmem:[%s0 + $0x8] sm:$0xff]
    %v17 = vmul.f32 %v15, 255.0
    %v18 = vmul.f32 %v16, 255.0
    %v19 = vld [vmem:[%s1] sm:$0xff]
    %v20 = vld [vmem:[%s1 + $0x8] sm:$0xff]
    %v21 = vld [vmem:[%s1 + $0x10] sm:$0xff]
    %v22 = vld [vmem:[%s1 + $0x18] sm:$0xff]
    %v23 = vld [vmem:[%s1 + $0x20] sm:$0xff]
    %v24 = vld [vmem:[%s1 + $0x28] sm:$0xff]
    %v25 = vld [vmem:[%s1 + $0x30] sm:$0xff]
    %v26 = vld [vmem:[%s1 + $0x38] sm:$0xff]
    %v27 = vld [vmem:[%s1 + $0x40] sm:$0xff]
    %v28 = vld [vmem:[%s1 + $0x48] sm:$0xff]
    %v29 = vld [vmem:[%s1 + $0x50] sm:$0xff]
    %v30 = vld [vmem:[%s1 + $0x58] sm:$0xff]
    %v31 = vld [vmem:[%s1 + $0x60] sm:$0xff]
    %v32 = vld [vmem:[%s1 + $0x68] sm:$0xff]
    %v33 = vld [vmem:[%s1 + $0x70] sm:$0xff]
    %v34 = vld [vmem:[%s1 + $0x78] sm:$0xff]
    %v35 = vld [vmem:[%s1 + $0x80] sm:$0xff]
    %v36 = vld [vmem:[%s1 + $0x88] sm:$0xff]
    %v37 = vld [vmem:[%s1 + $0x90] sm:$0xff]
    %v38 = vld [vmem:[%s1 + $0x98] sm:$0xff]
    %v39 = vld [vmem:[%s1 + $0xa0] sm:$0xff]
    %v40 = vld [vmem:[%s1 + $0xa8] sm:$0xff]
    %v41 = vld [vmem:[%s1 + $0xb0] sm:$0xff]
    %v42 = vld [vmem:[%s1 + $0xb8] sm:$0xff]
    %v43 = vld [vmem:[%s1 + $0xc0] sm:$0xff]
    %v44 = vld [vmem:[%s1 + $0xc8] sm:$0xff]
    %v45 = vld [vmem:[%s1 + $0xd0] sm:$0xff]
    %v46 = vld [vmem:[%s1 + $0xd8] sm:$0xff]
    %v47 = vld [vmem:[%s1 + $0xe0] sm:$0xff]
    %v48 = vld [vmem:[%s1 + $0xe8] sm:$0xff]
    %vm49 = vcmask 130048
    %v51 = vsel %vm49, %v19, 0
    %v54 = vsel %vm49, %v20, 0
    %v57 = vsel %vm49, %v21, 0
    %v60 = vsel %vm49, %v22, 0
    %v63 = vsel %vm49, %v23, 0
    %v66 = vsel %vm49, %v24, 0
    %v69 = vsel %vm49, %v25, 0
    %v72 = vsel %vm49, %v26, 0
    %v75 = vsel %vm49, %v27, 0
    %v78 = vsel %vm49, %v28, 0
    %v81 = vsel %vm49, %v29, 0
    %v84 = vsel %vm49, %v30, 0
    %v87 = vsel %vm49, %v31, 0
    %v90 = vsel %vm49, %v32, 0
    %v93 = vsel %vm49, %v33, 0
    %v96 = vsel %vm49, %v34, 0
    %v99 = vsel %vm49, %v35, 0
    %v102 = vsel %vm49, %v36, 0
    %v105 = vsel %vm49, %v37, 0
    %v108 = vsel %vm49, %v38, 0
    %v111 = vsel %vm49, %v39, 0
    %v114 = vsel %vm49, %v40, 0
    %v117 = vsel %vm49, %v41, 0
    %v120 = vsel %vm49, %v42, 0
    %v123 = vsel %vm49, %v43, 0
    %v126 = vsel %vm49, %v44, 0
    %v129 = vsel %vm49, %v45, 0
    %v132 = vsel %vm49, %v46, 0
    %v135 = vsel %vm49, %v47, 0
    %v138 = vsel %vm49, %v48, 0
    %140 = vmatprep.subr.mxu0 0.0
    %141 = vmatpush1.msra.mxu0 0.0
    %142 = vmatprep.subr.mxu0 0.0
    %143 = vmatpush1.msra.mxu0 0.0
    %144 = vmatprep.subr.mxu0 0.0
    %145 = vmatpush1.msra.mxu0 0.0
    %146 = vmatprep.subr.mxu0 0.0
    %147 = vmatpush1.msra.mxu0 0.0
    %148 = vmatprep.subr.mxu0 0.0
    %149 = vmatpush1.msra.mxu0 0.0
    %150 = vmatprep.subr.mxu0 0.0
    %151 = vmatpush1.msra.mxu0 0.0
    %152 = vmatprep.subr.mxu0 0.0
    %153 = vmatpush1.msra.mxu0 0.0
    %154 = vmatprep.subr.mxu0 0.0
    %155 = vmatpush1.msra.mxu0 0.0
    %156 = vmatprep.subr.mxu0 0.0
    %157 = vmatpush1.msra.mxu0 0.0
    %158 = vmatprep.subr.mxu0 0.0
    %159 = vmatpush1.msra.mxu0 0.0
    %160 = vmatprep.subr.mxu0 0.0
    %161 = vmatpush1.msra.mxu0 0.0
    %162 = vmatprep.subr.mxu0 0.0
    %163 = vmatpush1.msra.mxu0 0.0
    %164 = vmatprep.subr.mxu0 0.0
    %165 = vmatpush1.msra.mxu0 0.0
    %166 = vmatprep.subr.mxu0 0.0
    %167 = vmatpush1.msra.mxu0 0.0
    %168 = vmatprep.subr.mxu0 0.0
    %169 = vmatpush1.msra.mxu0 %v18
    %170 = vmatprep.subr.mxu0 0.0
    %171 = vmatpush1.msra.mxu0 %v17
    %172 = vmatprep.subr.mxu0 0.0
    %173 = vmatpush2.msra.mxu0 0.0
    %174 = vmatprep.subr.mxu0 0.0
    %175 = vmatpush2.msra.mxu0 0.0
    %176 = vmatprep.subr.mxu0 0.0
    %177 = vmatpush2.msra.mxu0 0.0
    %178 = vmatprep.subr.mxu0 0.0
    %179 = vmatpush2.msra.mxu0 0.0
    %180 = vmatprep.subr.mxu0 0.0
    %181 = vmatpush2.msra.mxu0 0.0
    %182 = vmatprep.subr.mxu0 0.0
    %183 = vmatpush2.msra.mxu0 0.0
    %184 = vmatprep.subr.mxu0 0.0
    %185 = vmatpush2.msra.mxu0 0.0
    %186 = vmatprep.subr.mxu0 0.0
    %187 = vmatpush2.msra.mxu0 0.0
    %188 = vmatprep.subr.mxu0 0.0
    %189 = vmatpush2.msra.mxu0 0.0
    %190 = vmatprep.subr.mxu0 0.0
    %191 = vmatpush2.msra.mxu0 0.0
    %192 = vmatprep.subr.mxu0 0.0
    %193 = vmatpush2.msra.mxu0 0.0
    %194 = vmatprep.subr.mxu0 0.0
    %195 = vmatpush2.msra.mxu0 0.0
    %196 = vmatprep.subr.mxu0 0.0
    %197 = vmatpush2.msra.mxu0 0.0
    %198 = vmatprep.subr.mxu0 0.0
    %199 = vmatpush2.msra.mxu0 0.0
    %200 = vmatprep.subr.mxu0 0.0
    %201 = vmatpush2.msra.mxu0 0.0
    %202 = vmatprep.subr.mxu0 0.0
    %203 = vmatpush2.msra.mxu0 0.0
    %204 = vmatprep.mubr.f32.mxu0 0.0
    %205 = vmatmul.mubr.f32.gmra.mxu0 %v51
    %v206 = vpop.f32.mrf.mxu0
    %v207 = vadd.f32 0.0, %v206
    %v208 = vpop.f32.mrf.mxu0
    %209 = vmatprep.mubr.f32.mxu0 0.0
    %210 = vmatmul.mubr.f32.gmra.mxu0 %v54
    %v211 = vpop.f32.mrf.mxu0
    %v212 = vadd.f32 0.0, %v211
    %v213 = vpop.f32.mrf.mxu0
    %214 = vmatprep.mubr.f32.mxu0 0.0
    %215 = vmatmul.mubr.f32.gmra.mxu0 %v57
    %v216 = vpop.f32.mrf.mxu0
    %v217 = vadd.f32 0.0, %v216
    %v218 = vpop.f32.mrf.mxu0
    %219 = vmatprep.mubr.f32.mxu0 0.0
    %220 = vmatmul.mubr.f32.gmra.mxu0 %v60
    %v221 = vpop.f32.mrf.mxu0
    %v222 = vadd.f32 0.0, %v221
    %v223 = vpop.f32.mrf.mxu0
    %224 = vmatprep.mubr.f32.mxu0 0.0
    %225 = vmatmul.mubr.f32.gmra.mxu0 %v63
    %v226 = vpop.f32.mrf.mxu0
    %v227 = vadd.f32 0.0, %v226
    %v228 = vpop.f32.mrf.mxu0
    %229 = vmatprep.mubr.f32.mxu0 0.0
    %230 = vmatmul.mubr.f32.gmra.mxu0 %v66
    %v231 = vpop.f32.mrf.mxu0
    %v232 = vadd.f32 0.0, %v231
    %v233 = vpop.f32.mrf.mxu0
    %234 = vmatprep.mubr.f32.mxu0 0.0
    %235 = vmatmul.mubr.f32.gmra.mxu0 %v69
    %v236 = vpop.f32.mrf.mxu0
    %v237 = vadd.f32 0.0, %v236
    %v238 = vpop.f32.mrf.mxu0
    %239 = vmatprep.mubr.f32.mxu0 0.0
    %240 = vmatmul.mubr.f32.gmra.mxu0 %v72
    %v241 = vpop.f32.mrf.mxu0
    %v242 = vadd.f32 0.0, %v241
    %v243 = vpop.f32.mrf.mxu0
    %244 = vmatprep.mubr.f32.mxu0 0.0
    %245 = vmatmul.mubr.f32.gmra.mxu0 %v75
    %v246 = vpop.f32.mrf.mxu0
    %v247 = vadd.f32 0.0, %v246
    %v248 = vpop.f32.mrf.mxu0
    %249 = vmatprep.mubr.f32.mxu0 0.0
    %250 = vmatmul.mubr.f32.gmra.mxu0 %v78
    %v251 = vpop.f32.mrf.mxu0
    %v252 = vadd.f32 0.0, %v251
    %v253 = vpop.f32.mrf.mxu0
    %254 = vmatprep.mubr.f32.mxu0 0.0
    %255 = vmatmul.mubr.f32.gmra.mxu0 %v81
    %v256 = vpop.f32.mrf.mxu0
    %v257 = vadd.f32 0.0, %v256
    %v258 = vpop.f32.mrf.mxu0
    %259 = vmatprep.mubr.f32.mxu0 0.0
    %260 = vmatmul.mubr.f32.gmra.mxu0 %v84
    %v261 = vpop.f32.mrf.mxu0
    %v262 = vadd.f32 0.0, %v261
    %v263 = vpop.f32.mrf.mxu0
    %264 = vmatprep.mubr.f32.mxu0 0.0
    %265 = vmatmul.mubr.f32.gmra.mxu0 %v87
    %v266 = vpop.f32.mrf.mxu0
    %v267 = vadd.f32 0.0, %v266
    %v268 = vpop.f32.mrf.mxu0
    %269 = vmatprep.mubr.f32.mxu0 0.0
    %270 = vmatmul.mubr.f32.gmra.mxu0 %v90
    %v271 = vpop.f32.mrf.mxu0
    %v272 = vadd.f32 0.0, %v271
    %v273 = vpop.f32.mrf.mxu0
    %274 = vmatprep.mubr.f32.mxu0 0.0
    %275 = vmatmul.mubr.f32.gmra.mxu0 %v93
    %v276 = vpop.f32.mrf.mxu0
    %v277 = vadd.f32 0.0, %v276
    %v278 = vpop.f32.mrf.mxu0
    %279 = vmatprep.mubr.f32.mxu0 0.0
    %280 = vmatmul.mubr.f32.gmra.mxu0 %v96
    %v281 = vpop.f32.mrf.mxu0
    %v282 = vadd.f32 0.0, %v281
    %v283 = vpop.f32.mrf.mxu0
    %284 = vmatprep.mubr.f32.mxu0 0.0
    %285 = vmatmul.mubr.f32.gmra.mxu0 %v99
    %v286 = vpop.f32.mrf.mxu0
    %v287 = vadd.f32 0.0, %v286
    %v288 = vpop.f32.mrf.mxu0
    %289 = vmatprep.mubr.f32.mxu0 0.0
    %290 = vmatmul.mubr.f32.gmra.mxu0 %v102
    %v291 = vpop.f32.mrf.mxu0
    %v292 = vadd.f32 0.0, %v291
    %v293 = vpop.f32.mrf.mxu0
    %294 = vmatprep.mubr.f32.mxu0 0.0
    %295 = vmatmul.mubr.f32.gmra.mxu0 %v105
    %v296 = vpop.f32.mrf.mxu0
    %v297 = vadd.f32 0.0, %v296
    %v298 = vpop.f32.mrf.mxu0
    %299 = vmatprep.mubr.f32.mxu0 0.0
    %300 = vmatmul.mubr.f32.gmra.mxu0 %v108
    %v301 = vpop.f32.mrf.mxu0
    %v302 = vadd.f32 0.0, %v301
    %v303 = vpop.f32.mrf.mxu0
    %304 = vmatprep.mubr.f32.mxu0 0.0
    %305 = vmatmul.mubr.f32.gmra.mxu0 %v111
    %v306 = vpop.f32.mrf.mxu0
    %v307 = vadd.f32 0.0, %v306
    %v308 = vpop.f32.mrf.mxu0
    %309 = vmatprep.mubr.f32.mxu0 0.0
    %310 = vmatmul.mubr.f32.gmra.mxu0 %v114
    %v311 = vpop.f32.mrf.mxu0
    %v312 = vadd.f32 0.0, %v311
    %v313 = vpop.f32.mrf.mxu0
    %314 = vmatprep.mubr.f32.mxu0 0.0
    %315 = vmatmul.mubr.f32.gmra.mxu0 %v117
    %v316 = vpop.f32.mrf.mxu0
    %v317 = vadd.f32 0.0, %v316
    %v318 = vpop.f32.mrf.mxu0
    %319 = vmatprep.mubr.f32.mxu0 0.0
    %320 = vmatmul.mubr.f32.gmra.mxu0 %v120
    %v321 = vpop.f32.mrf.mxu0
    %v322 = vadd.f32 0.0, %v321
    %v323 = vpop.f32.mrf.mxu0
    %324 = vmatprep.mubr.f32.mxu0 0.0
    %325 = vmatmul.mubr.f32.gmra.mxu0 %v123
    %v326 = vpop.f32.mrf.mxu0
    %v327 = vadd.f32 0.0, %v326
    %v328 = vpop.f32.mrf.mxu0
    %329 = vmatprep.mubr.f32.mxu0 0.0
    %330 = vmatmul.mubr.f32.gmra.mxu0 %v126
    %v331 = vpop.f32.mrf.mxu0
    %v332 = vadd.f32 0.0, %v331
    %v333 = vpop.f32.mrf.mxu0
    %334 = vmatprep.mubr.f32.mxu0 0.0
    %335 = vmatmul.mubr.f32.gmra.mxu0 %v129
    %v336 = vpop.f32.mrf.mxu0
    %v337 = vadd.f32 0.0, %v336
    %v338 = vpop.f32.mrf.mxu0
    %339 = vmatprep.mubr.f32.mxu0 0.0
    %340 = vmatmul.mubr.f32.gmra.mxu0 %v132
    %v341 = vpop.f32.mrf.mxu0
    %v342 = vadd.f32 0.0, %v341
    %v343 = vpop.f32.mrf.mxu0
    %344 = vmatprep.mubr.f32.mxu0 0.0
    %345 = vmatmul.mubr.f32.gmra.mxu0 %v135
    %v346 = vpop.f32.mrf.mxu0
    %v347 = vadd.f32 0.0, %v346
    %v348 = vpop.f32.mrf.mxu0
    %349 = vmatprep.mubr.f32.mxu0 0.0
    %350 = vmatmul.mubr.f32.gmra.mxu0 %v138
    %v351 = vpop.f32.mrf.mxu0
    %v352 = vadd.f32 0.0, %v351
    %v353 = vpop.f32.mrf.mxu0
    %354 = vdwg.mxu0
    %v355 = vld [vmem:[%s2] sm:$0xff]
    %v356 = vld [vmem:[%s2 + $0x8] sm:$0xff]
    %v357 = vld [vmem:[%s2 + $0x10] sm:$0xff]
    %v358 = vld [vmem:[%s2 + $0x18] sm:$0xff]
    %v360 = vsel %vm49, %v207, 0
    %v363 = vsel %vm49, %v212, 0
    %v366 = vsel %vm49, %v217, 0
    %v369 = vsel %vm49, %v222, 0
    %v372 = vsel %vm49, %v227, 0
    %v375 = vsel %vm49, %v232, 0
    %v378 = vsel %vm49, %v237, 0
    %v381 = vsel %vm49, %v242, 0
    %v384 = vsel %vm49, %v247, 0
    %v387 = vsel %vm49, %v252, 0
    %v390 = vsel %vm49, %v257, 0
    %v393 = vsel %vm49, %v262, 0
    %v396 = vsel %vm49, %v267, 0
    %v399 = vsel %vm49, %v272, 0
    %v402 = vsel %vm49, %v277, 0
    %v405 = vsel %vm49, %v282, 0
    %v408 = vsel %vm49, %v287, 0
    %v411 = vsel %vm49, %v292, 0
    %v414 = vsel %vm49, %v297, 0
    %v417 = vsel %vm49, %v302, 0
    %v420 = vsel %vm49, %v307, 0
    %v423 = vsel %vm49, %v312, 0
    %v426 = vsel %vm49, %v317, 0
    %v429 = vsel %vm49, %v322, 0
    %v432 = vsel %vm49, %v327, 0
    %v435 = vsel %vm49, %v332, 0
    %v438 = vsel %vm49, %v337, 0
    %v441 = vsel %vm49, %v342, 0
    %v444 = vsel %vm49, %v347, 0
    %v447 = vsel %vm49, %v352, 0
    %449 = vmatprep.subr.mxu0 0.0
    %450 = vmatpush1.msra.mxu0 0.0
    %451 = vmatprep.subr.mxu0 0.0
    %452 = vmatpush1.msra.mxu0 0.0
    %453 = vmatprep.subr.mxu0 0.0
    %454 = vmatpush1.msra.mxu0 0.0
    %455 = vmatprep.subr.mxu0 0.0
    %456 = vmatpush1.msra.mxu0 0.0
    %457 = vmatprep.subr.mxu0 0.0
    %458 = vmatpush1.msra.mxu0 0.0
    %459 = vmatprep.subr.mxu0 0.0
    %460 = vmatpush1.msra.mxu0 0.0
    %461 = vmatprep.subr.mxu0 0.0
    %462 = vmatpush1.msra.mxu0 0.0
    %463 = vmatprep.subr.mxu0 0.0
    %464 = vmatpush1.msra.mxu0 0.0
    %465 = vmatprep.subr.mxu0 0.0
    %466 = vmatpush1.msra.mxu0 0.0
    %467 = vmatprep.subr.mxu0 0.0
    %468 = vmatpush1.msra.mxu0 0.0
    %469 = vmatprep.subr.mxu0 0.0
    %470 = vmatpush1.msra.mxu0 0.0
    %471 = vmatprep.subr.mxu0 0.0
    %472 = vmatpush1.msra.mxu0 0.0
    %473 = vmatprep.subr.mxu0 0.0
    %474 = vmatpush1.msra.mxu0 0.0
    %475 = vmatprep.subr.mxu0 0.0
    %476 = vmatpush1.msra.mxu0 0.0
    %477 = vmatprep.subr.mxu0 %v358
    %478 = vmatpush1.msra.mxu0 %v357
    %479 = vmatprep.subr.mxu0 %v356
    %480 = vmatpush1.msra.mxu0 %v355
    %481 = vmatprep.subr.mxu0 0.0
    %482 = vmatpush2.msra.mxu0 0.0
    %483 = vmatprep.subr.mxu0 0.0
    %484 = vmatpush2.msra.mxu0 0.0
    %485 = vmatprep.subr.mxu0 0.0
    %486 = vmatpush2.msra.mxu0 0.0
    %487 = vmatprep.subr.mxu0 0.0
    %488 = vmatpush2.msra.mxu0 0.0
    %489 = vmatprep.subr.mxu0 0.0
    %490 = vmatpush2.msra.mxu0 0.0
    %491 = vmatprep.subr.mxu0 0.0
    %492 = vmatpush2.msra.mxu0 0.0
    %493 = vmatprep.subr.mxu0 0.0
    %494 = vmatpush2.msra.mxu0 0.0
    %495 = vmatprep.subr.mxu0 0.0
    %496 = vmatpush2.msra.mxu0 0.0
    %497 = vmatprep.subr.mxu0 0.0
    %498 = vmatpush2.msra.mxu0 0.0
    %499 = vmatprep.subr.mxu0 0.0
    %500 = vmatpush2.msra.mxu0 0.0
    %501 = vmatprep.subr.mxu0 0.0
    %502 = vmatpush2.msra.mxu0 0.0
    %503 = vmatprep.subr.mxu0 0.0
    %504 = vmatpush2.msra.mxu0 0.0
    %505 = vmatprep.subr.mxu0 0.0
    %506 = vmatpush2.msra.mxu0 0.0
    %507 = vmatprep.subr.mxu0 0.0
    %508 = vmatpush2.msra.mxu0 0.0
    %509 = vmatprep.subr.mxu0 0.0
    %510 = vmatpush2.msra.mxu0 0.0
    %511 = vmatprep.subr.mxu0 0.0
    %512 = vmatpush2.msra.mxu0 0.0
    %513 = vmatprep.mubr.f32.mxu0 0.0
    %514 = vmatmul.mubr.f32.gmra.mxu0 %v360
    %v515 = vpop.f32.mrf.mxu0
    %v516 = vadd.f32 0.0, %v515
    %v517 = vpop.f32.mrf.mxu0
    %v518 = vadd.f32 0.0, %v517
    %519 = vmatprep.mubr.f32.mxu0 0.0
    %520 = vmatmul.mubr.f32.gmra.mxu0 %v363
    %v521 = vpop.f32.mrf.mxu0
    %v522 = vadd.f32 0.0, %v521
    %v523 = vpop.f32.mrf.mxu0
    %v524 = vadd.f32 0.0, %v523
    %525 = vmatprep.mubr.f32.mxu0 0.0
    %526 = vmatmul.mubr.f32.gmra.mxu0 %v366
    %v527 = vpop.f32.mrf.mxu0
    %v528 = vadd.f32 0.0, %v527
    %v529 = vpop.f32.mrf.mxu0
    %v530 = vadd.f32 0.0, %v529
    %531 = vmatprep.mubr.f32.mxu0 0.0
    %532 = vmatmul.mubr.f32.gmra.mxu0 %v369
    %v533 = vpop.f32.mrf.mxu0
    %v534 = vadd.f32 0.0, %v533
    %v535 = vpop.f32.mrf.mxu0
    %v536 = vadd.f32 0.0, %v535
    %537 = vmatprep.mubr.f32.mxu0 0.0
    %538 = vmatmul.mubr.f32.gmra.mxu0 %v372
    %v539 = vpop.f32.mrf.mxu0
    %v540 = vadd.f32 0.0, %v539
    %v541 = vpop.f32.mrf.mxu0
    %v542 = vadd.f32 0.0, %v541
    %543 = vmatprep.mubr.f32.mxu0 0.0
    %544 = vmatmul.mubr.f32.gmra.mxu0 %v375
    %v545 = vpop.f32.mrf.mxu0
    %v546 = vadd.f32 0.0, %v545
    %v547 = vpop.f32.mrf.mxu0
    %v548 = vadd.f32 0.0, %v547
    %549 = vmatprep.mubr.f32.mxu0 0.0
    %550 = vmatmul.mubr.f32.gmra.mxu0 %v378
    %v551 = vpop.f32.mrf.mxu0
    %v552 = vadd.f32 0.0, %v551
    %v553 = vpop.f32.mrf.mxu0
    %v554 = vadd.f32 0.0, %v553
    %555 = vmatprep.mubr.f32.mxu0 0.0
    %556 = vmatmul.mubr.f32.gmra.mxu0 %v381
    %v557 = vpop.f32.mrf.mxu0
    %v558 = vadd.f32 0.0, %v557
    %v559 = vpop.f32.mrf.mxu0
    %v560 = vadd.f32 0.0, %v559
    %561 = vmatprep.mubr.f32.mxu0 0.0
    %562 = vmatmul.mubr.f32.gmra.mxu0 %v384
    %v563 = vpop.f32.mrf.mxu0
    %v564 = vadd.f32 0.0, %v563
    %v565 = vpop.f32.mrf.mxu0
    %v566 = vadd.f32 0.0, %v565
    %567 = vmatprep.mubr.f32.mxu0 0.0
    %568 = vmatmul.mubr.f32.gmra.mxu0 %v387
    %v569 = vpop.f32.mrf.mxu0
    %v570 = vadd.f32 0.0, %v569
    %v571 = vpop.f32.mrf.mxu0
    %v572 = vadd.f32 0.0, %v571
    %573 = vmatprep.mubr.f32.mxu0 0.0
    %574 = vmatmul.mubr.f32.gmra.mxu0 %v390
    %v575 = vpop.f32.mrf.mxu0
    %v576 = vadd.f32 0.0, %v575
    %v577 = vpop.f32.mrf.mxu0
    %v578 = vadd.f32 0.0, %v577
    %579 = vmatprep.mubr.f32.mxu0 0.0
    %580 = vmatmul.mubr.f32.gmra.mxu0 %v393
    %v581 = vpop.f32.mrf.mxu0
    %v582 = vadd.f32 0.0, %v581
    %v583 = vpop.f32.mrf.mxu0
    %v584 = vadd.f32 0.0, %v583
    %585 = vmatprep.mubr.f32.mxu0 0.0
    %586 = vmatmul.mubr.f32.gmra.mxu0 %v396
    %v587 = vpop.f32.mrf.mxu0
    %v588 = vadd.f32 0.0, %v587
    %v589 = vpop.f32.mrf.mxu0
    %v590 = vadd.f32 0.0, %v589
    %591 = vmatprep.mubr.f32.mxu0 0.0
    %592 = vmatmul.mubr.f32.gmra.mxu0 %v399
    %v593 = vpop.f32.mrf.mxu0
    %v594 = vadd.f32 0.0, %v593
    %v595 = vpop.f32.mrf.mxu0
    %v596 = vadd.f32 0.0, %v595
    %597 = vmatprep.mubr.f32.mxu0 0.0
    %598 = vmatmul.mubr.f32.gmra.mxu0 %v402
    %v599 = vpop.f32.mrf.mxu0
    %v600 = vadd.f32 0.0, %v599
    %v601 = vpop.f32.mrf.mxu0
    %v602 = vadd.f32 0.0, %v601
    %603 = vmatprep.mubr.f32.mxu0 0.0
    %604 = vmatmul.mubr.f32.gmra.mxu0 %v405
    %v605 = vpop.f32.mrf.mxu0
    %v606 = vadd.f32 0.0, %v605
    %v607 = vpop.f32.mrf.mxu0
    %v608 = vadd.f32 0.0, %v607
    %609 = vmatprep.mubr.f32.mxu0 0.0
    %610 = vmatmul.mubr.f32.gmra.mxu0 %v408
    %v611 = vpop.f32.mrf.mxu0
    %v612 = vadd.f32 0.0, %v611
    %v613 = vpop.f32.mrf.mxu0
    %v614 = vadd.f32 0.0, %v613
    %615 = vmatprep.mubr.f32.mxu0 0.0
    %616 = vmatmul.mubr.f32.gmra.mxu0 %v411
    %v617 = vpop.f32.mrf.mxu0
    %v618 = vadd.f32 0.0, %v617
    %v619 = vpop.f32.mrf.mxu0
    %v620 = vadd.f32 0.0, %v619
    %621 = vmatprep.mubr.f32.mxu0 0.0
    %622 = vmatmul.mubr.f32.gmra.mxu0 %v414
    %v623 = vpop.f32.mrf.mxu0
    %v624 = vadd.f32 0.0, %v623
    %v625 = vpop.f32.mrf.mxu0
    %v626 = vadd.f32 0.0, %v625
    %627 = vmatprep.mubr.f32.mxu0 0.0
    %628 = vmatmul.mubr.f32.gmra.mxu0 %v417
    %v629 = vpop.f32.mrf.mxu0
    %v630 = vadd.f32 0.0, %v629
    %v631 = vpop.f32.mrf.mxu0
    %v632 = vadd.f32 0.0, %v631
    %633 = vmatprep.mubr.f32.mxu0 0.0
    %634 = vmatmul.mubr.f32.gmra.mxu0 %v420
    %v635 = vpop.f32.mrf.mxu0
    %v636 = vadd.f32 0.0, %v635
    %v637 = vpop.f32.mrf.mxu0
    %v638 = vadd.f32 0.0, %v637
    %639 = vmatprep.mubr.f32.mxu0 0.0
    %640 = vmatmul.mubr.f32.gmra.mxu0 %v423
    %v641 = vpop.f32.mrf.mxu0
    %v642 = vadd.f32 0.0, %v641
    %v643 = vpop.f32.mrf.mxu0
    %v644 = vadd.f32 0.0, %v643
    %645 = vmatprep.mubr.f32.mxu0 0.0
    %646 = vmatmul.mubr.f32.gmra.mxu0 %v426
    %v647 = vpop.f32.mrf.mxu0
    %v648 = vadd.f32 0.0, %v647
    %v649 = vpop.f32.mrf.mxu0
    %v650 = vadd.f32 0.0, %v649
    %651 = vmatprep.mubr.f32.mxu0 0.0
    %652 = vmatmul.mubr.f32.gmra.mxu0 %v429
    %v653 = vpop.f32.mrf.mxu0
    %v654 = vadd.f32 0.0, %v653
    %v655 = vpop.f32.mrf.mxu0
    %v656 = vadd.f32 0.0, %v655
    %657 = vmatprep.mubr.f32.mxu0 0.0
    %658 = vmatmul.mubr.f32.gmra.mxu0 %v432
    %v659 = vpop.f32.mrf.mxu0
    %v660 = vadd.f32 0.0, %v659
    %v661 = vpop.f32.mrf.mxu0
    %v662 = vadd.f32 0.0, %v661
    %663 = vmatprep.mubr.f32.mxu0 0.0
    %664 = vmatmul.mubr.f32.gmra.mxu0 %v435
    %v665 = vpop.f32.mrf.mxu0
    %v666 = vadd.f32 0.0, %v665
    %v667 = vpop.f32.mrf.mxu0
    %v668 = vadd.f32 0.0, %v667
    %669 = vmatprep.mubr.f32.mxu0 0.0
    %670 = vmatmul.mubr.f32.gmra.mxu0 %v438
    %v671 = vpop.f32.mrf.mxu0
    %v672 = vadd.f32 0.0, %v671
    %v673 = vpop.f32.mrf.mxu0
    %v674 = vadd.f32 0.0, %v673
    %675 = vmatprep.mubr.f32.mxu0 0.0
    %676 = vmatmul.mubr.f32.gmra.mxu0 %v441
    %v677 = vpop.f32.mrf.mxu0
    %v678 = vadd.f32 0.0, %v677
    %v679 = vpop.f32.mrf.mxu0
    %v680 = vadd.f32 0.0, %v679
    %681 = vmatprep.mubr.f32.mxu0 0.0
    %682 = vmatmul.mubr.f32.gmra.mxu0 %v444
    %v683 = vpop.f32.mrf.mxu0
    %v684 = vadd.f32 0.0, %v683
    %v685 = vpop.f32.mrf.mxu0
    %v686 = vadd.f32 0.0, %v685
    %687 = vmatprep.mubr.f32.mxu0 0.0
    %688 = vmatmul.mubr.f32.gmra.mxu0 %v447
    %v689 = vpop.f32.mrf.mxu0
    %v690 = vadd.f32 0.0, %v689
    %v691 = vpop.f32.mrf.mxu0
    %v692 = vadd.f32 0.0, %v691
    %693 = vdwg.mxu0
    %694 = vst [vmem:[#allocation2] sm:$0xff] %v516
    %695 = vst [vmem:[#allocation2 + $0x8] sm:$0xff] %v518
    %696 = vst [vmem:[#allocation2 + $0x10] sm:$0xff] %v522
    %697 = vst [vmem:[#allocation2 + $0x18] sm:$0xff] %v524
    %698 = vst [vmem:[#allocation2 + $0x20] sm:$0xff] %v528
    %699 = vst [vmem:[#allocation2 + $0x28] sm:$0xff] %v530
    %700 = vst [vmem:[#allocation2 + $0x30] sm:$0xff] %v534
    %701 = vst [vmem:[#allocation2 + $0x38] sm:$0xff] %v536
    %702 = vst [vmem:[#allocation2 + $0x40] sm:$0xff] %v540
    %703 = vst [vmem:[#allocation2 + $0x48] sm:$0xff] %v542
    %704 = vst [vmem:[#allocation2 + $0x50] sm:$0xff] %v546
    %705 = vst [vmem:[#allocation2 + $0x58] sm:$0xff] %v548
    %706 = vst [vmem:[#allocation2 + $0x60] sm:$0xff] %v552
    %707 = vst [vmem:[#allocation2 + $0x68] sm:$0xff] %v554
    %708 = vst [vmem:[#allocation2 + $0x70] sm:$0xff] %v558
    %709 = vst [vmem:[#allocation2 + $0x78] sm:$0xff] %v560
    %710 = vst [vmem:[#allocation2 + $0x80] sm:$0xff] %v564
    %711 = vst [vmem:[#allocation2 + $0x88] sm:$0xff] %v566
    %712 = vst [vmem:[#allocation2 + $0x90] sm:$0xff] %v570
    %713 = vst [vmem:[#allocation2 + $0x98] sm:$0xff] %v572
    %714 = vst [vmem:[#allocation2 + $0xa0] sm:$0xff] %v576
    %715 = vst [vmem:[#allocation2 + $0xa8] sm:$0xff] %v578
    %716 = vst [vmem:[#allocation2 + $0xb0] sm:$0xff] %v582
    %717 = vst [vmem:[#allocation2 + $0xb8] sm:$0xff] %v584
    %718 = vst [vmem:[#allocation2 + $0xc0] sm:$0xff] %v588
    %719 = vst [vmem:[#allocation2 + $0xc8] sm:$0xff] %v590
    %720 = vst [vmem:[#allocation2 + $0xd0] sm:$0xff] %v594
    %721 = vst [vmem:[#allocation2 + $0xd8] sm:$0xff] %v596
    %722 = vst [vmem:[#allocation2 + $0xe0] sm:$0xff] %v600
    %723 = vst [vmem:[#allocation2 + $0xe8] sm:$0xff] %v602
    %724 = vst [vmem:[#allocation2 + $0xf0] sm:$0xff] %v606
    %725 = vst [vmem:[#allocation2 + $0xf8] sm:$0xff] %v608
    %726 = vst [vmem:[#allocation2 + $0x100] sm:$0xff] %v612
    %727 = vst [vmem:[#allocation2 + $0x108] sm:$0xff] %v614
    %728 = vst [vmem:[#allocation2 + $0x110] sm:$0xff] %v618
    %729 = vst [vmem:[#allocation2 + $0x118] sm:$0xff] %v620
    %730 = vst [vmem:[#allocation2 + $0x120] sm:$0xff] %v624
    %731 = vst [vmem:[#allocation2 + $0x128] sm:$0xff] %v626
    %732 = vst [vmem:[#allocation2 + $0x130] sm:$0xff] %v630
    %733 = vst [vmem:[#allocation2 + $0x138] sm:$0xff] %v632
    %734 = vst [vmem:[#allocation2 + $0x140] sm:$0xff] %v636
    %735 = vst [vmem:[#allocation2 + $0x148] sm:$0xff] %v638
    %736 = vst [vmem:[#allocation2 + $0x150] sm:$0xff] %v642
    %737 = vst [vmem:[#allocation2 + $0x158] sm:$0xff] %v644
    %738 = vst [vmem:[#allocation2 + $0x160] sm:$0xff] %v648
    %739 = vst [vmem:[#allocation2 + $0x168] sm:$0xff] %v650
    %740 = vst [vmem:[#allocation2 + $0x170] sm:$0xff] %v654
    %741 = vst [vmem:[#allocation2 + $0x178] sm:$0xff] %v656
    %742 = vst [vmem:[#allocation2 + $0x180] sm:$0xff] %v660
    %743 = vst [vmem:[#allocation2 + $0x188] sm:$0xff] %v662
    %744 = vst [vmem:[#allocation2 + $0x190] sm:$0xff] %v666
    %745 = vst [vmem:[#allocation2 + $0x198] sm:$0xff] %v668
    %746 = vst [vmem:[#allocation2 + $0x1a0] sm:$0xff] %v672
    %747 = vst [vmem:[#allocation2 + $0x1a8] sm:$0xff] %v674
    %748 = vst [vmem:[#allocation2 + $0x1b0] sm:$0xff] %v678
    %749 = vst [vmem:[#allocation2 + $0x1b8] sm:$0xff] %v680
    %750 = vst [vmem:[#allocation2 + $0x1c0] sm:$0xff] %v684
    %751 = vst [vmem:[#allocation2 + $0x1c8] sm:$0xff] %v686
    %752 = vst [vmem:[#allocation2 + $0x1d0] sm:$0xff] %v690
    %753 = vst [vmem:[#allocation2 + $0x1d8] sm:$0xff] %v692
    // Predicated region
    $region14: #{tpu_custom_call.1} parent=1 // pred_check
      _
    $region15: #{tpu_custom_call.1} parent=1 // pred_check_branch
      %755 = sbr.rel (0) target = $region17
    $region16: #{tpu_custom_call.1} parent=1 // pred_region
      %s757 = ssub.s32 7680, 7680
      %758 = vsyncadd [#allocation3], %s757
      %s759 = sshll.u32 [#allocation2], 4
      %s760 = int_to_ptr.vmem [resolvable:$true] %s759
      %765 = dma.vmem_to_hbm [thread:$0]  %s760, 7680, %s3, [#allocation3], 256, 256, 16
    $region17: #{tpu_custom_call.1} parent=1 // pred_fallthru
      _
    // Predicated region
    $region18: #{tpu_custom_call.1} parent=1 // pred_check
      _
    $region19: #{tpu_custom_call.1} parent=1 // pred_check_branch
      %767 = sbr.rel (0) target = $region21
    $region20: #{tpu_custom_call.1} parent=1 // pred_region
      %768 = dma.done [#allocation3], 7680
    $region21: #{tpu_custom_call.1} parent=1 // pred_fallthru
      _
    %769 = vsyncpa [#allocation3], 1

</llo_original>
